<compile_context>
chip_gen: v6e
topology: v6e:2x2x1
jax: 0.10.0
libtpu: 0.0.40
codegen_flags: <defaults>
</compile_context>

<pallas_src>
import functools

import jax
import jax.numpy as jnp
from jax import lax
from jax.experimental import pallas as pl
from jax.experimental.pallas import tpu as pltpu

LANES = 128
SUBLANES = 8


def _focal_partial_kernel(pred_ref, targ_ref, out_ref, *,
                          alpha, gamma, tm, steps, m_rows):
    c = pl.program_id(0)          # "parallel" split (2nd TensorCore on v7x)
    j = pl.program_id(1)          # sequential accumulation axis
    bi = c * steps + j            # global row-block index

    @pl.when(j == 0)
    def _():
        out_ref[...] = jnp.zeros_like(out_ref)

    x = pred_ref[...].astype(jnp.float32)
    t = targ_ref[...].astype(jnp.float32)

    # One exp per element, reused by the stable BCE log-term and by sigmoid.
    e = jnp.exp(-jnp.abs(x))
    # Numerically stable binary_cross_entropy_with_logits (reduction='none'):
    #   bce = max(x, 0) - x * t + log(1 + exp(-|x|))
    bce = jnp.maximum(x, 0.0) - x * t + jnp.log1p(e)

    # sigmoid(x) derived from e.  Approx reciprocal (EUP slot) + one Newton
    # refinement keeps ~1e-7 relative error while offloading the saturating
    # vector-ALU slot on v6e/v7x.
    d = 1.0 + e
    r = pl.reciprocal(d, approx=True)
    r = r * (2.0 - d * r)                       # Newton step
    p = jnp.where(x >= 0.0, r, e * r)

    # Folded algebra (constants resolved at trace time):
    #   1 - pt   = p + t - 2*p*t
    #   alpha_t  = (1 - alpha) + (2*alpha - 1) * t
    one_minus_pt = p + t - 2.0 * (p * t)
    alpha_t = (1.0 - alpha) + (2.0 * alpha - 1.0) * t

    # Integer gamma (default 2.0) -> VPU multiply chain instead of pow's
    # log+exp on the single EUP slot.
    if float(gamma).is_integer() and gamma >= 0:
        g = int(gamma)
        if g == 0:
            mod = jnp.ones_like(one_minus_pt)
        else:
            mod = one_minus_pt
            for _ in range(g - 1):
                mod = mod * one_minus_pt
    else:
        mod = jnp.power(one_minus_pt, gamma)

    focal = alpha_t * mod * bce

    def accumulate(v):
        # VPU-only fold of the (tm,128) tile into the resident (8,128) block.
        out_ref[...] += jnp.sum(v.reshape(tm // SUBLANES, SUBLANES, LANES), axis=0)

    is_full = (bi + 1) * tm <= m_rows

    @pl.when(is_full)
    def _():
        accumulate(focal)

    @pl.when(jnp.logical_not(is_full))
    def _():
        # Only the (at most one) partial edge block -- and any fully
        # out-of-range clamped block of the last split -- pays for the mask.
        # Rows >= m_rows hold garbage left by the partial DMA; mask them out.
        rows_valid = m_rows - bi * tm           # int32 row math: no overflow
        row = lax.broadcasted_iota(jnp.int32, (tm, LANES), 0)
        accumulate(jnp.where(row < rows_valid, focal, 0.0))


def focal_loss_pallas(pred, target, alpha=0.25, gamma=2.0,
                      tile_rows=4096, num_splits=2):
    """Mean binary focal loss with logits, matching the PyTorch FocalLoss."""
    assert pred.shape == target.shape
    total = pred.size
    assert total > 0

    pred_flat = pred.reshape(-1)      # metadata-only reshape (no HBM pass)
    targ_flat = target.reshape(-1)

    # Pad only when total is not a multiple of 128 (plus a floor of one
    # (8,128) tile for tiny inputs).  Pad values are NEUTRAL for this loss
    # (pred=+100, target=1 -> focal == 0), so no lane mask is ever needed.
    # In the common 128-divisible case there is NO wrapper pad/copy at all.
    padded_total = max(-(-total // LANES) * LANES, SUBLANES * LANES)
    if padded_total != total:
        pad = padded_total - total
        pred_flat = jnp.pad(pred_flat, (0, pad), constant_values=100.0)
        targ_flat = jnp.pad(targ_flat, (0, pad), constant_values=1)

    m = padded_total // LANES                   # rows of the (m, 128) slab
    pred2d = pred_flat.reshape(m, LANES)
    targ2d = targ_flat.reshape(m, LANES)

    # Tile-row selection: multiple of 8, no larger than one split's share,
    # no larger than the array (partial edge block covers the remainder).
    tile_rows = max(SUBLANES, (int(tile_rows) // SUBLANES) * SUBLANES)
    rows_per_split = -(-m // num_splits)
    tm = min(tile_rows, -(-rows_per_split // SUBLANES) * SUBLANES)
    tm = min(tm, (m // SUBLANES) * SUBLANES)
    tm = max(tm, SUBLANES)

    num_blocks = -(-m // tm)
    steps = -(-num_blocks // num_splits)

    def row_block_map(c, j):
        # Clamp so the (rare) trailing steps of the last split re-read the
        # final block; their contribution is masked to zero in-kernel.
        return (jnp.minimum(c * steps + j, num_blocks - 1), 0)

    kernel = functools.partial(
        _focal_partial_kernel,
        alpha=float(alpha), gamma=float(gamma),
        tm=tm, steps=steps, m_rows=m,
    )

    partials = pl.pallas_call(
        kernel,
        out_shape=jax.ShapeDtypeStruct((num_splits * SUBLANES, LANES), jnp.float32),
        grid_spec=pltpu.PrefetchScalarGridSpec(
            num_scalar_prefetch=0,
            grid=(num_splits, steps),
            in_specs=[
                pl.BlockSpec((tm, LANES), row_block_map),
                pl.BlockSpec((tm, LANES), row_block_map),
            ],
            out_specs=pl.BlockSpec((SUBLANES, LANES), lambda c, j: (c, 0)),
        ),
        compiler_params=pltpu.CompilerParams(
            dimension_semantics=("parallel", "arbitrary"),
        ),
    )(pred2d, targ2d)

    # Final tiny cross-lane reduce + mean (glue, matches torch .mean()).
    return (jnp.sum(partials) / jnp.float32(total)).astype(jnp.float32)


def focal_loss_ref(pred, target, alpha=0.25, gamma=2.0):
    x = pred.astype(jnp.float32)
    t = target.astype(jnp.float32)
    bce = jnp.maximum(x, 0.0) - x * t + jnp.log1p(jnp.exp(-jnp.abs(x)))
    p = jax.nn.sigmoid(x)
    pt = p * t + (1.0 - p) * (1.0 - t)
    alpha_t = alpha * t + (1.0 - alpha) * (1.0 - t)
    return jnp.mean(alpha_t * (1.0 - pt) ** gamma * bce)


if __name__ == "__main__":
    key = jax.random.PRNGKey(0)
    k1, k2 = jax.random.split(key)

    # NCHW logits and binary targets, as in the PyTorch module's typical use.
    N, C, H, W = 2, 4, 16, 16
    pred = jax.random.normal(k1, (N, C, H, W), dtype=jnp.float32) * 2.0
    target = (jax.random.uniform(k2, (N, C, H, W)) > 0.5).astype(jnp.float32)

    loss = jax.block_until_ready(focal_loss_pallas(pred, target, alpha=0.25, gamma=2.0))
    ref = focal_loss_ref(pred, target, alpha=0.25, gamma=2.0)
    assert jnp.allclose(loss, ref, rtol=1e-5, atol=1e-6), (loss, ref)

    # Non-128-multiple element count -> exercises the neutral lane pad and the
    # masked partial-edge-block path.
    pred_odd = jax.random.normal(k1, (3, 5, 7, 11), dtype=jnp.float32)
    targ_odd = (jax.random.uniform(k2, (3, 5, 7, 11)) > 0.5).astype(jnp.float32)
    loss_odd = jax.block_until_ready(focal_loss_pallas(pred_odd, targ_odd))
    ref_odd = focal_loss_ref(pred_odd, targ_odd)
    assert jnp.allclose(loss_odd, ref_odd, rtol=1e-5, atol=1e-6), (loss_odd, ref_odd)

    print("KERNEL_OK")
</pallas_src>

<mosaic_0001>
module attributes {stable_mosaic.version = 11 : i64} {
  func.func @_focal_partial_kernel(%arg0: i32, %arg1: i32, %arg2: memref<8x128xf32, #tpu.memory_space<vmem>>, %arg3: memref<8x128xf32, #tpu.memory_space<vmem>>, %arg4: memref<8x128xf32, #tpu.memory_space<vmem>>) attributes {dimension_semantics = [#tpu.dimension_semantics<parallel>, #tpu.dimension_semantics<arbitrary>], iteration_bounds = array<i64: 2, 1>, scalar_prefetch = 0 : i64, scratch_operands = 0 : i64, tpu.core_type = #tpu.core_type<tc>, window_params = [{transform_indices = @transform_0, window_bounds = array<i64: 8, 128>}, {transform_indices = @transform_1, window_bounds = array<i64: 8, 128>}, {transform_indices = @transform_2, window_bounds = array<i64: 8, 128>}]} {
    %c1_i32 = arith.constant 1 : i32
    %0 = arith.muli %arg0, %c1_i32 : i32
    %1 = arith.addi %0, %arg1 : i32
    %c0_i32 = arith.constant 0 : i32
    %2 = arith.cmpi eq, %arg1, %c0_i32 : i32
    %3 = arith.extui %2 : i1 to i32
    %c0_i32_0 = arith.constant 0 : i32
    %4 = arith.cmpi ne, %3, %c0_i32_0 : i32
    scf.if %4 {
      %cst_14 = arith.constant 0.000000e+00 : f32
      %48 = vector.broadcast %cst_14 : f32 to vector<8x128xf32>
      %c0_15 = arith.constant 0 : index
      %c0_16 = arith.constant 0 : index
      %49 = vector.load %arg4[%c0_15, %c0_16] : memref<8x128xf32, #tpu.memory_space<vmem>>, vector<8x128xf32>
      tpu.vector_store %arg4[%c0_15, %c0_16], %48 {strides = array<i32>} : memref<8x128xf32, #tpu.memory_space<vmem>>, vector<8x128xf32>,
    } else {
    }
    %c0 = arith.constant 0 : index
    %c0_1 = arith.constant 0 : index
    %5 = vector.load %arg2[%c0, %c0_1] : memref<8x128xf32, #tpu.memory_space<vmem>>, vector<8x128xf32>
    %c0_2 = arith.constant 0 : index
    %c0_3 = arith.constant 0 : index
    %6 = vector.load %arg3[%c0_2, %c0_3] : memref<8x128xf32, #tpu.memory_space<vmem>>, vector<8x128xf32>
    %7 = math.absf %5 : vector<8x128xf32>
    %cst = arith.constant 0.000000e+00 : f32
    %8 = vector.broadcast %cst : f32 to vector<8x128xf32>
    %9 = arith.subf %8, %7 : vector<8x128xf32>
    %10 = math.exp %9 : vector<8x128xf32>
    %cst_4 = arith.constant 0.000000e+00 : f32
    %11 = vector.broadcast %cst_4 : f32 to vector<8x128xf32>
    %12 = arith.maximumf %5, %11 : vector<8x128xf32>
    %13 = arith.mulf %5, %6 : vector<8x128xf32>
    %14 = arith.subf %12, %13 : vector<8x128xf32>
    %15 = math.log1p %10 : vector<8x128xf32>
    %16 = arith.addf %14, %15 : vector<8x128xf32>
    %cst_5 = arith.constant 1.000000e+00 : f32
    %17 = vector.broadcast %cst_5 : f32 to vector<8x128xf32>
    %18 = arith.addf %17, %10 : vector<8x128xf32>
    %19 = tpu.reciprocal %18 {approx = true} : vector<8x128xf32> -> vector<8x128xf32>
    %20 = arith.mulf %18, %19 : vector<8x128xf32>
    %cst_6 = arith.constant 2.000000e+00 : f32
    %21 = vector.broadcast %cst_6 : f32 to vector<8x128xf32>
    %22 = arith.subf %21, %20 : vector<8x128xf32>
    %23 = arith.mulf %19, %22 : vector<8x128xf32>
    %cst_7 = arith.constant 0.000000e+00 : f32
    %24 = vector.broadcast %cst_7 : f32 to vector<8x128xf32>
    %25 = arith.cmpf oge, %5, %24 : vector<8x128xf32>
    %26 = arith.mulf %10, %23 : vector<8x128xf32>
    %27 = arith.select %25, %23, %26 : vector<8x128xi1>, vector<8x128xf32>
    %28 = arith.addf %27, %6 : vector<8x128xf32>
    %29 = arith.mulf %27, %6 : vector<8x128xf32>
    %cst_8 = arith.constant 2.000000e+00 : f32
    %30 = vector.broadcast %cst_8 : f32 to vector<8x128xf32>
    %31 = arith.mulf %30, %29 : vector<8x128xf32>
    %32 = arith.subf %28, %31 : vector<8x128xf32>
    %cst_9 = arith.constant -5.000000e-01 : f32
    %33 = vector.broadcast %cst_9 : f32 to vector<8x128xf32>
    %34 = arith.mulf %33, %6 : vector<8x128xf32>
    %cst_10 = arith.constant 7.500000e-01 : f32
    %35 = vector.broadcast %cst_10 : f32 to vector<8x128xf32>
    %36 = arith.addf %35, %34 : vector<8x128xf32>
    %37 = arith.mulf %32, %32 : vector<8x128xf32>
    %38 = arith.mulf %36, %37 : vector<8x128xf32>
    %39 = arith.mulf %38, %16 : vector<8x128xf32>
    %c1_i32_11 = arith.constant 1 : i32
    %40 = arith.addi %1, %c1_i32_11 : i32
    %c8_i32 = arith.constant 8 : i32
    %41 = arith.muli %40, %c8_i32 : i32
    %c16_i32 = arith.constant 16 : i32
    %42 = arith.cmpi sle, %41, %c16_i32 : i32
    %43 = arith.extui %42 : i1 to i32
    %c0_i32_12 = arith.constant 0 : i32
    %44 = arith.cmpi ne, %43, %c0_i32_12 : i32
    scf.if %44 {
      %c0_14 = arith.constant 0 : index
      %c0_15 = arith.constant 0 : index
      %48 = vector.load %arg4[%c0_14, %c0_15] : memref<8x128xf32, #tpu.memory_space<vmem>>, vector<8x128xf32>
      %49 = vector.shape_cast %39 : vector<8x128xf32> to vector<1x8x128xf32>
      %cst_16 = arith.constant dense<0.000000e+00> : vector<8x128xf32>
      %50 = vector.multi_reduction <add>, %49, %cst_16 [0] : vector<1x8x128xf32> to vector<8x128xf32>
      %51 = arith.addf %48, %50 : vector<8x128xf32>
      %c0_17 = arith.constant 0 : index
      %c0_18 = arith.constant 0 : index
      %52 = vector.load %arg4[%c0_17, %c0_18] : memref<8x128xf32, #tpu.memory_space<vmem>>, vector<8x128xf32>
      tpu.vector_store %arg4[%c0_17, %c0_18], %51 {strides = array<i32>} : memref<8x128xf32, #tpu.memory_space<vmem>>, vector<8x128xf32>,
    } else {
    }
    %true = arith.constant true
    %45 = arith.xori %42, %true : i1
    %46 = arith.extui %45 : i1 to i32
    %c0_i32_13 = arith.constant 0 : i32
    %47 = arith.cmpi ne, %46, %c0_i32_13 : i32
    scf.if %47 {
      %c8_i32_14 = arith.constant 8 : i32
      %48 = arith.muli %1, %c8_i32_14 : i32
      %c16_i32_15 = arith.constant 16 : i32
      %49 = arith.subi %c16_i32_15, %48 : i32
      %50 = tpu.iota {dimensions = array<i32: 0>} : vector<8x128xi32>
      %51 = vector.broadcast %49 : i32 to vector<8x128xi32>
      %52 = arith.cmpi slt, %50, %51 : vector<8x128xi32>
      %cst_16 = arith.constant 0.000000e+00 : f32
      %53 = vector.broadcast %cst_16 : f32 to vector<8x128xf32>
      %54 = arith.select %52, %39, %53 : vector<8x128xi1>, vector<8x128xf32>
      %c0_17 = arith.constant 0 : index
      %c0_18 = arith.constant 0 : index
      %55 = vector.load %arg4[%c0_17, %c0_18] : memref<8x128xf32, #tpu.memory_space<vmem>>, vector<8x128xf32>
      %56 = vector.shape_cast %54 : vector<8x128xf32> to vector<1x8x128xf32>
      %cst_19 = arith.constant dense<0.000000e+00> : vector<8x128xf32>
      %57 = vector.multi_reduction <add>, %56, %cst_19 [0] : vector<1x8x128xf32> to vector<8x128xf32>
      %58 = arith.addf %55, %57 : vector<8x128xf32>
      %c0_20 = arith.constant 0 : index
      %c0_21 = arith.constant 0 : index
      %59 = vector.load %arg4[%c0_20, %c0_21] : memref<8x128xf32, #tpu.memory_space<vmem>>, vector<8x128xf32>
      tpu.vector_store %arg4[%c0_20, %c0_21], %58 {strides = array<i32>} : memref<8x128xf32, #tpu.memory_space<vmem>>, vector<8x128xf32>,
    } else {
    }
    return
  }
  func.func @transform_0(%arg0: i32, %arg1: i32) -> (i32, i32) {
    %c1_i32 = arith.constant 1 : i32
    %0 = arith.muli %arg0, %c1_i32 : i32
    %1 = arith.addi %0, %arg1 : i32
    %c1_i32_0 = arith.constant 1 : i32
    %2 = arith.minsi %1, %c1_i32_0 : i32
    %c0_i32 = arith.constant 0 : i32
    %c0_i32_1 = arith.constant 0 : i32
    return %2, %c0_i32 : i32, i32
  }
  func.func @transform_1(%arg0: i32, %arg1: i32) -> (i32, i32) {
    %c1_i32 = arith.constant 1 : i32
    %0 = arith.muli %arg0, %c1_i32 : i32
    %1 = arith.addi %0, %arg1 : i32
    %c1_i32_0 = arith.constant 1 : i32
    %2 = arith.minsi %1, %c1_i32_0 : i32
    %c0_i32 = arith.constant 0 : i32
    %c0_i32_1 = arith.constant 0 : i32
    return %2, %c0_i32 : i32, i32
  }
  func.func @transform_2(%arg0: i32, %arg1: i32) -> (i32, i32) {
    %c0_i32 = arith.constant 0 : i32
    %c0_i32_0 = arith.constant 0 : i32
    return %arg0, %c0_i32 : i32, i32
  }
}

</mosaic_0001>

<llo_original>
// kernel: tpu_custom_call.1
$region0: #{tpu_custom_call.1}
  #allocation0 [shape = 'u32[]', space=smem, size = 0x4, offset = 0x4, fixed_abs, tag = 'smem constant byte address 0x4 - core index']
  #allocation1 [shape = 'u32[144,128]{1,0:T(1,128)}', space=vmem, size = 0x12000, scoped, tag = 'internal scratch']
  %s0 = inlined_call_operand.hbm [shape: f32[16,128], index: 0, kind: input, shape index: {}]
  %s1 = inlined_call_operand.hbm [shape: f32[16,128], index: 1, kind: input, shape index: {}]
  %s2 = inlined_call_operand.hbm [shape: f32[16,128], index: 2, kind: output, shape index: {}]
  %s3 = sld [smem:[#allocation0]]
  $region61: #{tpu_custom_call.1} parent=0
    _
  %s5 = ssub.s32 1, %s3
  %s6 = scalar_select 0, %s5, %s3
  $region1: #{tpu_custom_call.1} parent=0
    #allocation2 [shape = 'u8[8192]{0}', space=vmem, size = 0x2000, scoped, tag = 'input window, operand 0']
    #allocation3 [shape = 's32[2]{0}', space=sflag, size = 0x8, scoped, tag = 'scoped memory for tpu_custom_call.1']
    #allocation4 [shape = 's32[2]{0}', space=sflag, size = 0x8, scoped, tag = 'scoped memory for tpu_custom_call.1']
    #allocation5 [shape = 'u8[8192]{0}', space=vmem, size = 0x2000, scoped, tag = 'input window, operand 1']
    #allocation6 [shape = 's32[2]{0}', space=sflag, size = 0x8, scoped, tag = 'scoped memory for tpu_custom_call.1']
    #allocation7 [shape = 'u8[8192]{0}', space=vmem, size = 0x2000, scoped, tag = 'output window, operand 0']
    %7 = vsyncpa [#allocation3], 0
    %s8 = scalar_lea.sflag [#allocation3], 1
    %9 = vsyncpa %s8, 0
    %10 = vsyncpa [#allocation6], 0
    %s11 = scalar_lea.sflag [#allocation6], 1
    %12 = vsyncpa %s11, 0
    %13 = vsyncpa [#allocation4], 0
    %s14 = scalar_lea.sflag [#allocation4], 1
    %15 = vsyncpa %s14, 0
    loop: start=0, step=1, limit=4
    $region2: #{tpu_custom_call.1} parent=1 // loop_pre_header
      _
    $region3: #{tpu_custom_call.1} parent=1 // loop_header
      %s17 = sphi 0, %s21
      %p18 = scmp.ge.s32.totalorder %s17, 4
      %s24 = sphi 0, %s36
      %s25 = sphi 0, %s32
      %s26 = sphi 0, %s24
      %s27 = sphi 0, %s25
      %s28 = sphi 0, %s26
      %s29 = sphi 0, %s27
      %s45 = sphi 0, %s47
      %s48 = sphi 0, %s45
      %s49 = sphi 0, %s48
      %s65 = sphi 0, %s49
      %s77 = sphi 0, %s79
      %s80 = sphi 0, %s77
      %s81 = sphi 0, %s80
      %s97 = sphi 0, %s81
      %s103 = sphi 0, %s105
      %s106 = sphi 0, %s103
      %s107 = sphi 0, %s106
      %s123 = sphi 0, %s107
    $region4: #{tpu_custom_call.1} parent=1 // loop_header_branch
      %20 = sbr.rel (%p18) target = $region8
    $region5: #{tpu_custom_call.1} parent=1 // loop_body
      %s22 = ssub.s32 %s17, 1
      %s23 = ssub.s32 %s17, 2
      %s30 = sadd.s32 1, %s25
      %p31 = scmp.ge.s32.totalorder %s30, 1
      %s32 = scalar_select %p31, 0, %s30
      %s33 = sadd.s32 1, %s24
      %s34 = scalar_select %p31, %s33, %s24
      %p35 = scmp.ge.s32.totalorder %s34, 2
      %s36 = scalar_select %p35, 0, %s34
      %s37 = sadd.s32 %s24, %s25
      %p38 = scmp.lt.s32.totalorder %s37, 1
      %s39 = scalar_select %p38, %s37, 1
      %s40 = sadd.s32 %s36, %s32
      %p41 = scmp.lt.s32.totalorder %s40, 1
      %s42 = scalar_select %p41, %s40, 1
      %s43 = ssub.s32 %s39, %s42
      %p44 = scmp.eq.s32.totalorder %s43, 0
      %s46 = sadd.s32 %s45, 1
      %s47 = scalar_select %p44, %s45, %s46
      %p50 = pneg %p44
      %p51 = scmp.eq.s32.totalorder %s17, 1
      %p52 = por %p50, %p51
      %p53 = scmp.ne.s32.totalorder %s45, %s48
      %p54 = scmp.eq.s32.totalorder %s17, 0
      %p55 = por %p53, %p54
      %p56 = scmp.ne.s32.totalorder %s45, %s48
      %p57 = scmp.eq.s32.totalorder %s22, 1
      %p58 = por %p56, %p57
      %p59 = scmp.ne.s32.totalorder %s48, %s49
      %p60 = scmp.eq.s32.totalorder %s22, 0
      %p61 = por %p59, %p60
      %p62 = scmp.ne.s32.totalorder %s48, %s49
      %p63 = scmp.eq.s32.totalorder %s23, 1
      %p64 = por %p62, %p63
      %p66 = scmp.ne.s32.totalorder %s49, %s65
      %p67 = scmp.eq.s32.totalorder %s23, 0
      %p68 = por %p66, %p67
      %s69 = sadd.s32 %s24, %s25
      %p70 = scmp.lt.s32.totalorder %s69, 1
      %s71 = scalar_select %p70, %s69, 1
      %s72 = sadd.s32 %s36, %s32
      %p73 = scmp.lt.s32.totalorder %s72, 1
      %s74 = scalar_select %p73, %s72, 1
      %s75 = ssub.s32 %s71, %s74
      %p76 = scmp.eq.s32.totalorder %s75, 0
      %s78 = sadd.s32 %s77, 1
      %s79 = scalar_select %p76, %s77, %s78
      %p82 = pneg %p76
      %p83 = scmp.eq.s32.totalorder %s17, 1
      %p84 = por %p82, %p83
      %p85 = scmp.ne.s32.totalorder %s77, %s80
      %p86 = scmp.eq.s32.totalorder %s17, 0
      %p87 = por %p85, %p86
      %p88 = scmp.ne.s32.totalorder %s77, %s80
      %p89 = scmp.eq.s32.totalorder %s22, 1
      %p90 = por %p88, %p89
      %p91 = scmp.ne.s32.totalorder %s80, %s81
      %p92 = scmp.eq.s32.totalorder %s22, 0
      %p93 = por %p91, %p92
      %p94 = scmp.ne.s32.totalorder %s80, %s81
      %p95 = scmp.eq.s32.totalorder %s23, 1
      %p96 = por %p94, %p95
      %p98 = scmp.ne.s32.totalorder %s81, %s97
      %p99 = scmp.eq.s32.totalorder %s23, 0
      %p100 = por %p98, %p99
      %s101 = ssub.s32 %s24, %s36
      %p102 = scmp.eq.s32.totalorder %s101, 0
      %s104 = sadd.s32 %s103, 1
      %s105 = scalar_select %p102, %s103, %s104
      %p108 = pneg %p102
      %p109 = scmp.eq.s32.totalorder %s17, 1
      %p110 = por %p108, %p109
      %p111 = scmp.ne.s32.totalorder %s103, %s106
      %p112 = scmp.eq.s32.totalorder %s17, 0
      %p113 = por %p111, %p112
      %p114 = scmp.ne.s32.totalorder %s103, %s106
      %p115 = scmp.eq.s32.totalorder %s22, 1
      %p116 = por %p114, %p115
      %p117 = scmp.ne.s32.totalorder %s106, %s107
      %p118 = scmp.eq.s32.totalorder %s22, 0
      %p119 = por %p117, %p118
      %p120 = scmp.ne.s32.totalorder %s106, %s107
      %p121 = scmp.eq.s32.totalorder %s23, 1
      %p122 = por %p120, %p121
      %p124 = scmp.ne.s32.totalorder %s107, %s123
      %p125 = scmp.eq.s32.totalorder %s23, 0
      %p126 = por %p124, %p125
      %p127 = scmp.le.s32.totalorder 1, %s17
      %p128 = scmp.lt.s32.totalorder %s17, 3
      %p129 = pnand %p127, %p128
      %p130 = pneg %p129
      // Predicated region
      $region9: #{tpu_custom_call.1} parent=5 // pred_check
        _
      $region10: #{tpu_custom_call.1} parent=5 // pred_check_branch
        %132 = sbr.rel (%p129) target = $region12
      $region11: #{tpu_custom_call.1} parent=5 // pred_region
        %s133 = ssub.s32 %s17, 1
      $region12: #{tpu_custom_call.1} parent=5 // pred_fallthru
        _
      %p134 = scmp.lt.s32.totalorder %s17, 2
      // Predicated region
      $region13: #{tpu_custom_call.1} parent=5 // pred_check
        %p135 = pneg %p134
      $region14: #{tpu_custom_call.1} parent=5 // pred_check_branch
        %137 = sbr.rel (%p135) target = $region16
      $region15: #{tpu_custom_call.1} parent=5 // pred_region
        // Predicated region
        $region17: #{tpu_custom_call.1} parent=15 // pred_check
          %p138 = pneg %p55
        $region18: #{tpu_custom_call.1} parent=15 // pred_check_branch
          %140 = sbr.rel (%p138) target = $region20
        $region19: #{tpu_custom_call.1} parent=15 // pred_region
          %s141 = sand.u32 %s45, 1
          %s142 = scalar_lea.sflag [#allocation3], %s141
          %s143 = sand.u32 %s45, 1
          %s144 = smul.addr %s143, 8
          %s145 = scalar_lea.vmem [#allocation2], %s144
          %s146 = sadd.s32 %s24, %s25
          %p147 = scmp.lt.s32.totalorder %s146, 1
          %s148 = scalar_select %p147, %s146, 1
          %s150 = ssub.s32 128, 128
          %151 = vsyncadd %s142, %s150
          %s152 = smul.addr %s148, 128
          %s153 = scalar_lea.hbm %s0, %s152
          %s155 = sshll.u32 %s145, 4
          %s156 = int_to_ptr.vmem [resolvable:$true] %s155
          %158 = dma.hbm_to_vmem [thread:$0]  %s153, 128, %s156, %s142
        $region20: #{tpu_custom_call.1} parent=15 // pred_fallthru
          _
        // Predicated region
        $region21: #{tpu_custom_call.1} parent=15 // pred_check
          %p159 = pneg %p87
        $region22: #{tpu_custom_call.1} parent=15 // pred_check_branch
          %161 = sbr.rel (%p159) target = $region24
        $region23: #{tpu_custom_call.1} parent=15 // pred_region
          %s162 = sand.u32 %s77, 1
          %s163 = scalar_lea.sflag [#allocation6], %s162
          %s164 = sand.u32 %s77, 1
          %s165 = smul.addr %s164, 8
          %s166 = scalar_lea.vmem [#allocation5], %s165
          %s167 = sadd.s32 %s24, %s25
          %p168 = scmp.lt.s32.totalorder %s167, 1
          %s169 = scalar_select %p168, %s167, 1
          %s171 = ssub.s32 128, 128
          %172 = vsyncadd %s163, %s171
          %s173 = smul.addr %s169, 128
          %s174 = scalar_lea.hbm %s1, %s173
          %s176 = sshll.u32 %s166, 4
          %s177 = int_to_ptr.vmem [resolvable:$true] %s176
          %179 = dma.hbm_to_vmem [thread:$0]  %s174, 128, %s177, %s163
        $region24: #{tpu_custom_call.1} parent=15 // pred_fallthru
          _
      $region16: #{tpu_custom_call.1} parent=5 // pred_fallthru
        _
      %p180 = scmp.le.s32.totalorder 1, %s17
      %p181 = scmp.lt.s32.totalorder %s17, 3
      %p182 = pnand %p180, %p181
      %p183 = pneg %p182
      // Predicated region
      $region25: #{tpu_custom_call.1} parent=5 // pred_check
        _
      $region26: #{tpu_custom_call.1} parent=5 // pred_check_branch
        %185 = sbr.rel (%p182) target = $region28
      $region27: #{tpu_custom_call.1} parent=5 // pred_region
        %s186 = ssub.s32 %s17, 1
        %s187 = sand.u32 %s48, 1
        %s188 = scalar_lea.sflag [#allocation3], %s187
        %s189 = sand.u32 %s48, 1
        %s190 = smul.addr %s189, 8
        %s191 = scalar_lea.vmem [#allocation2], %s190
        // Predicated region
        $region29: #{tpu_custom_call.1} parent=27 // pred_check
          %p192 = pneg %p61
        $region30: #{tpu_custom_call.1} parent=27 // pred_check_branch
          %194 = sbr.rel (%p192) target = $region32
        $region31: #{tpu_custom_call.1} parent=27 // pred_region
          %195 = dma.done %s188, 128
        $region32: #{tpu_custom_call.1} parent=27 // pred_fallthru
          _
        %s196 = sand.u32 %s80, 1
        %s197 = scalar_lea.sflag [#allocation6], %s196
        %s198 = sand.u32 %s80, 1
        %s199 = smul.addr %s198, 8
        %s200 = scalar_lea.vmem [#allocation5], %s199
        // Predicated region
        $region33: #{tpu_custom_call.1} parent=27 // pred_check
          %p201 = pneg %p93
        $region34: #{tpu_custom_call.1} parent=27 // pred_check_branch
          %203 = sbr.rel (%p201) target = $region36
        $region35: #{tpu_custom_call.1} parent=27 // pred_region
          %204 = dma.done %s197, 128
        $region36: #{tpu_custom_call.1} parent=27 // pred_fallthru
          _
        %s205 = sand.u32 %s48, 1
        %s206 = scalar_lea.sflag [#allocation3], %s205
        %s207 = sand.u32 %s48, 1
        %s208 = smul.addr %s207, 8
        %s209 = scalar_lea.vmem [#allocation2], %s208
        %p210 = pneg %p61
        %p211 = pneg %p58
        %s212 = sand.u32 %s80, 1
        %s213 = scalar_lea.sflag [#allocation6], %s212
        %s214 = sand.u32 %s80, 1
        %s215 = smul.addr %s214, 8
        %s216 = scalar_lea.vmem [#allocation5], %s215
        %p217 = pneg %p93
        %p218 = pneg %p90
        %p219 = pneg %p119
        %p220 = pneg %p116
        %s221 = sand.u32 %s106, 1
        %s222 = scalar_lea.sflag [#allocation4], %s221
        %s223 = sand.u32 %s106, 1
        %s224 = smul.addr %s223, 8
        %s225 = scalar_lea.vmem [#allocation7], %s224
        %s226 = sadd.s32 %s26, %s27
        %p227 = scmp.lt.s32.totalorder %s226, 1
        %s228 = scalar_select %p227, %s226, 1
        %s229 = sadd.s32 %s26, %s27
        %p230 = scmp.lt.s32.totalorder %s229, 1
        %s231 = scalar_select %p230, %s229, 1
        %s232 = sadd.s32 %s26, %s27
        %p233 = scmp.eq.s32.totalorder %s27, 0
        // Predicated region
        $region37: #{tpu_custom_call.1} parent=27 // pred_check
          %p234 = pneg %p233
        $region38: #{tpu_custom_call.1} parent=27 // pred_check_branch
          %236 = sbr.rel (%p234) target = $region40
        $region39: #{tpu_custom_call.1} parent=27 // pred_region
          %237 = vst [vmem:[%s225] sm:$0xff] 0.0
        $region40: #{tpu_custom_call.1} parent=27 // pred_fallthru
          _
        %v238 = vld [vmem:[%s191] sm:$0xff]
        %v239 = vld [vmem:[%s200] sm:$0xff]
        %v240 = vand.u32 2147483647, %v238
        %v241 = vsub.f32 0.0, %v240
        %v242 = vmul.f32 %v241, 1.442695
        %v243 = vpow.pop %v242
        %v244 = vmax.f32 %v238, 0.0
        %v245 = vmul.f32 %v238, %v239
        %v246 = vsub.f32 %v244, %v245
        %v247 = vadd.f32 %v243, 1.0
        %v248 = vlog2.pop %v247
        %v249 = vmul.f32 %v248, 0.6931472
        %v250 = vmul.f32 -0.5, %v243
        %v251 = vadd.f32 %v250, 1.0
        %v252 = vmul.f32 %v251, %v243
        %v253 = vand.u32 2147483647, %v243
        %vm254 = vcmp.lt.f32.partialorder %v253, 0.0004427343
        %v255 = vsel %vm254, %v252, %v249
        %v256 = vadd.f32 %v246, %v255
        %v257 = vadd.f32 %v243, 1.0
        %v258 = vrcp.pop %v257
        %v259 = vmul.f32 %v257, %v258
        %v260 = vsub.f32 2.0, %v259
        %v261 = vmul.f32 %v258, %v260
        %vm262 = vcmp.ge.f32.partialorder %v238, 0.0
        %v263 = vmul.f32 %v243, %v261
        %v264 = vsel %vm262, %v261, %v263
        %v265 = vadd.f32 %v264, %v239
        %v266 = vmul.f32 %v264, %v239
        %v267 = vmul.f32 %v266, 2.0
        %v268 = vsub.f32 %v265, %v267
        %v269 = vmul.f32 %v239, -0.5
        %v270 = vadd.f32 %v269, 0.75
        %v271 = vmul.f32 %v268, %v268
        %v272 = vmul.f32 %v270, %v271
        %v273 = vmul.f32 %v272, %v256
        %s274 = sadd.s32 %s232, 1
        %s275 = smul.u32 %s274, 8
        %p276 = scmp.le.s32.totalorder %s275, 16
        // Predicated region
        $region41: #{tpu_custom_call.1} parent=27 // pred_check
          %p277 = pneg %p276
        $region42: #{tpu_custom_call.1} parent=27 // pred_check_branch
          %279 = sbr.rel (%p277) target = $region44
        $region43: #{tpu_custom_call.1} parent=27 // pred_region
          %v280 = vld [vmem:[%s225] sm:$0xff]
          %v281 = vadd.f32 %v273, 0.0
          %v282 = vadd.f32 %v280, %v281
          %283 = vst [vmem:[%s225] sm:$0xff] %v282
        $region44: #{tpu_custom_call.1} parent=27 // pred_fallthru
          _
        %p284 = scmp.gt.s32.totalorder %s275, 16
        // Predicated region
        $region45: #{tpu_custom_call.1} parent=27 // pred_check
          %p285 = pneg %p284
        $region46: #{tpu_custom_call.1} parent=27 // pred_check_branch
          %287 = sbr.rel (%p285) target = $region48
        $region47: #{tpu_custom_call.1} parent=27 // pred_region
          %s288 = smul.u32 %s232, 8
          %s289 = ssub.s32 16, %s288
          %v290 = vlaneseq
          %v291 = vshrl.u32 %v290, 7
          %v292 = vstv %s289
          %vm293 = vcmp.lt.s32.totalorder %v291, %v292
          %v294 = vsel %vm293, %v273, 0.0
          %v295 = vld [vmem:[%s225] sm:$0xff]
          %v296 = vadd.f32 %v294, 0.0
          %v297 = vadd.f32 %v295, %v296
          %298 = vst [vmem:[%s225] sm:$0xff] %v297
        $region48: #{tpu_custom_call.1} parent=27 // pred_fallthru
          _
        %s299 = sand.u32 %s106, 1
        %s300 = scalar_lea.sflag [#allocation4], %s299
        %s301 = sand.u32 %s106, 1
        %s302 = smul.addr %s301, 8
        %s303 = scalar_lea.vmem [#allocation7], %s302
        // Predicated region
        $region49: #{tpu_custom_call.1} parent=27 // pred_check
          %p304 = pneg %p116
        $region50: #{tpu_custom_call.1} parent=27 // pred_check_branch
          %306 = sbr.rel (%p304) target = $region52
        $region51: #{tpu_custom_call.1} parent=27 // pred_region
          %s308 = ssub.s32 128, 128
          %309 = vsyncadd %s300, %s308
          %s310 = smul.addr %s26, 128
          %s311 = scalar_lea.hbm %s2, %s310
          %s313 = sshll.u32 %s303, 4
          %s314 = int_to_ptr.vmem [resolvable:$true] %s313
          %316 = dma.vmem_to_hbm [thread:$0]  %s314, 128, %s311, %s300
        $region52: #{tpu_custom_call.1} parent=27 // pred_fallthru
          _
      $region28: #{tpu_custom_call.1} parent=5 // pred_fallthru
        _
      %p317 = scmp.le.s32.totalorder 2, %s17
      // Predicated region
      $region53: #{tpu_custom_call.1} parent=5 // pred_check
        %p318 = pneg %p317
      $region54: #{tpu_custom_call.1} parent=5 // pred_check_branch
        %320 = sbr.rel (%p318) target = $region56
      $region55: #{tpu_custom_call.1} parent=5 // pred_region
        %s321 = ssub.s32 %s17, 2
        // Predicated region
        $region57: #{tpu_custom_call.1} parent=55 // pred_check
          %p322 = pneg %p122
        $region58: #{tpu_custom_call.1} parent=55 // pred_check_branch
          %324 = sbr.rel (%p322) target = $region60
        $region59: #{tpu_custom_call.1} parent=55 // pred_region
          %s325 = sand.u32 %s107, 1
          %s326 = scalar_lea.sflag [#allocation4], %s325
          %s327 = sand.u32 %s107, 1
          %s328 = smul.addr %s327, 8
          %s329 = scalar_lea.vmem [#allocation7], %s328
          %330 = dma.done %s326, 128
        $region60: #{tpu_custom_call.1} parent=55 // pred_fallthru
          _
      $region56: #{tpu_custom_call.1} parent=5 // pred_fallthru
        _
    $region6: #{tpu_custom_call.1} parent=1 // loop_footer
      %s21 = sadd.s32 1, %s17
    $region7: #{tpu_custom_call.1} parent=1 // loop_footer_branch
      %16 = sbr.rel target = $region3
    $region8: #{tpu_custom_call.1} parent=1 // loop_exit
      _
    %331 = vsyncpa [#allocation3], 1
    %s332 = scalar_lea.sflag [#allocation3], 1
    %333 = vsyncpa %s332, 1
    %334 = vsyncpa [#allocation6], 1
    %s335 = scalar_lea.sflag [#allocation6], 1
    %336 = vsyncpa %s335, 1
    %337 = vsyncpa [#allocation4], 1
    %s338 = scalar_lea.sflag [#allocation4], 1
    %339 = vsyncpa %s338, 1

</llo_original>
